<compile_context>
chip_gen: v6e
topology: v6e:2x2x1
jax: 0.10.0
libtpu: 0.0.40
codegen_flags: <defaults>
</compile_context>

<pallas_src>
import functools

import jax
import jax.numpy as jnp
from jax.experimental import pallas as pl
from jax.experimental.pallas import tpu as pltpu

_LANE = 128          # lane (fast) axis width
_MAX_TILE_ROWS = 256 # (4, 256, 128) f32 = 512 KiB per input block per grid step


def _pow(x, p):
    """Elementwise x**p with fast special cases; general case via EUP exp/log."""
    p = float(p)
    if p == 1.0:
        return x
    if p == 0.5:
        return jnp.sqrt(x)
    if p == 2.0:
        return x * x
    # x >= 0 in the valid domain (x == 0 -> exp(-inf) == 0, matching pow(0, p)).
    return jnp.exp(p * jnp.log(x))


def _shape_iou_kernel(p_ref, t_ref, o_ref, *, scale, eps):
    # Static ref slices (zero-cost views): each coordinate is a (TILE_R, 128) tile.
    # Literal port of mmdet shape_iou: chunk order is (x1, x2, y1, y2).
    b1_x1, b1_x2, b1_y1, b1_y2 = p_ref[0], p_ref[1], p_ref[2], p_ref[3]
    b2_x1, b2_x2, b2_y1, b2_y2 = t_ref[0], t_ref[1], t_ref[2], t_ref[3]

    w1 = b1_x2 - b1_x1
    h1 = b1_y2 - b1_y1 + eps
    w2 = b2_x2 - b2_x1
    h2 = b2_y2 - b2_y1 + eps

    inter = (jnp.maximum(jnp.minimum(b1_x2, b2_x2) - jnp.maximum(b1_x1, b2_x1), 0.0) *
             jnp.maximum(jnp.minimum(b1_y2, b2_y2) - jnp.maximum(b1_y1, b2_y1), 0.0))
    union = w1 * h1 + w2 * h2 - inter + eps
    iou = inter / union

    # Shape weights ww / hh (reuse the pow results for both).
    w2s = _pow(w2, scale)
    h2s = _pow(h2, scale)
    inv_den = 1.0 / (w2s + h2s)
    ww = 2.0 * w2s * inv_den
    hh = 2.0 * h2s * inv_den

    cw = jnp.maximum(b1_x2, b2_x2) - jnp.minimum(b1_x1, b2_x1)
    ch = jnp.maximum(b1_y2, b2_y2) - jnp.minimum(b1_y1, b2_y1)
    c2 = cw * cw + ch * ch + eps

    dx = b2_x1 + b2_x2 - b1_x1 - b1_x2
    dy = b2_y1 + b2_y2 - b1_y1 - b1_y2
    center_distance = 0.25 * (hh * (dx * dx) + ww * (dy * dy))
    distance = center_distance / c2

    omiga_w = hh * jnp.abs(w1 - w2) / jnp.maximum(w1, w2)
    omiga_h = ww * jnp.abs(h1 - h2) / jnp.maximum(h1, h2)
    tw = 1.0 - jnp.exp(-omiga_w)
    th = 1.0 - jnp.exp(-omiga_h)
    tw2 = tw * tw
    th2 = th * th
    shape_cost = tw2 * tw2 + th2 * th2

    o_ref[...] = 1.0 - (iou - distance - 0.5 * shape_cost)


def shape_iou_loss_elementwise(pred, target, scale=0.8, eps=1e-7):
    """Per-box Shape-IoU loss, shape (n, 1) — matches torch chunk(4, -1) semantics."""
    n = pred.shape[0]
    if n == 0:
        return jnp.zeros((0, 1), jnp.float32)

    rows = pl.cdiv(n, _LANE)
    tile_r = min(_MAX_TILE_ROWS, rows)
    rows_pad = pl.cdiv(rows, tile_r) * tile_r
    n_pad = rows_pad * _LANE

    def to_planes(x):
        x = x.astype(jnp.float32)
        x = jnp.pad(x, ((0, n_pad - n), (0, 0)))       # (n_pad, 4), pad along box axis
        return x.T.reshape(4, rows_pad, _LANE)          # coordinate-major planes

    p = to_planes(pred)
    t = to_planes(target)

    kernel = functools.partial(_shape_iou_kernel, scale=float(scale), eps=float(eps))

    out = pl.pallas_call(
        kernel,
        out_shape=jax.ShapeDtypeStruct((rows_pad, _LANE), jnp.float32),
        grid=(rows_pad // tile_r,),
        in_specs=[
            pl.BlockSpec((4, tile_r, _LANE), lambda i: (0, i, 0)),
            pl.BlockSpec((4, tile_r, _LANE), lambda i: (0, i, 0)),
        ],
        out_specs=pl.BlockSpec((tile_r, _LANE), lambda i: (i, 0)),
        compiler_params=pltpu.CompilerParams(dimension_semantics=("parallel",)),
    )(p, t)

    # Padded lanes may be NaN (0/0 in omiga terms on zero boxes); they are sliced off.
    return out.reshape(-1)[:n].reshape(n, 1)


class ShapeIoULoss:
    """JAX/Pallas re-implementation of mmdet ShapeIoULoss forward."""

    def __init__(self, eps: float = 1e-6, reduction: str = "mean",
                 loss_weight: float = 1.0, smooth_point: float = 0.1):
        self.eps = eps
        self.reduction = reduction
        self.loss_weight = loss_weight
        self.smooth_point = smooth_point  # unused by this loss's forward path

    def __call__(self, pred, target, gt_bbox=None, weight=None,
                 avg_factor=None, reduction_override=None):
        # TODO(synk): the torch "not torch.any(weight > 0) -> return (pred*weight).sum()"
        # early-exit is data-dependent control flow and is not replicated here.
        assert reduction_override in (None, "none", "mean", "sum")
        reduction = reduction_override if reduction_override else self.reduction

        if weight is not None and weight.ndim > 1:
            weight = weight.mean(-1)

        loss = shape_iou_loss_elementwise(pred, target, eps=self.eps)  # (n, 1)

        if weight is not None:
            loss = loss * weight.reshape(-1, 1)

        if reduction == "mean":
            if avg_factor is None:
                loss = loss.mean()
            else:
                loss = loss.sum() / avg_factor
        elif reduction == "sum":
            loss = loss.sum()
        # 'none' keeps (n, 1)

        return self.loss_weight * loss


def _shape_iou_ref(pred, target, scale=0.8, eps=1e-7):
    """Pure-JAX literal port of the torch shape_iou (for verification)."""
    b1_x1, b1_x2, b1_y1, b1_y2 = jnp.split(pred.astype(jnp.float32), 4, axis=-1)
    b2_x1, b2_x2, b2_y1, b2_y2 = jnp.split(target.astype(jnp.float32), 4, axis=-1)
    w1, h1 = b1_x2 - b1_x1, b1_y2 - b1_y1 + eps
    w2, h2 = b2_x2 - b2_x1, b2_y2 - b2_y1 + eps
    inter = (jnp.maximum(jnp.minimum(b1_x2, b2_x2) - jnp.maximum(b1_x1, b2_x1), 0) *
             jnp.maximum(jnp.minimum(b1_y2, b2_y2) - jnp.maximum(b1_y1, b2_y1), 0))
    union = w1 * h1 + w2 * h2 - inter + eps
    iou = inter / union
    ww = 2 * jnp.power(w2, scale) / (jnp.power(w2, scale) + jnp.power(h2, scale))
    hh = 2 * jnp.power(h2, scale) / (jnp.power(w2, scale) + jnp.power(h2, scale))
    cw = jnp.maximum(b1_x2, b2_x2) - jnp.minimum(b1_x1, b2_x1)
    ch = jnp.maximum(b1_y2, b2_y2) - jnp.minimum(b1_y1, b2_y1)
    c2 = cw ** 2 + ch ** 2 + eps
    center_distance_x = (b2_x1 + b2_x2 - b1_x1 - b1_x2) ** 2 / 4
    center_distance_y = (b2_y1 + b2_y2 - b1_y1 - b1_y2) ** 2 / 4
    center_distance = hh * center_distance_x + ww * center_distance_y
    distance = center_distance / c2
    omiga_w = hh * jnp.abs(w1 - w2) / jnp.maximum(w1, w2)
    omiga_h = ww * jnp.abs(h1 - h2) / jnp.maximum(h1, h2)
    shape_cost = (jnp.power(1 - jnp.exp(-omiga_w), 4) +
                  jnp.power(1 - jnp.exp(-omiga_h), 4))
    iou = iou - distance - 0.5 * shape_cost
    return 1 - iou


if __name__ == "__main__":
    key = jax.random.PRNGKey(0)
    k1, k2 = jax.random.split(key)

    def make_boxes(k, n):
        # Columns follow the literal chunk order of shape_iou: (x1, x2, y1, y2).
        ka, kb, kc, kd = jax.random.split(k, 4)
        x1 = jax.random.uniform(ka, (n, 1), jnp.float32) * 10.0
        y1 = jax.random.uniform(kb, (n, 1), jnp.float32) * 10.0
        w = jax.random.uniform(kc, (n, 1), jnp.float32) * 5.0 + 0.5
        h = jax.random.uniform(kd, (n, 1), jnp.float32) * 5.0 + 0.5
        return jnp.concatenate([x1, x1 + w, y1, y1 + h], axis=-1)  # (n, 4)

    # Case 1: small n, mean reduction.
    n = 16
    pred = make_boxes(k1, n)
    target = make_boxes(k2, n)

    loss_mod = ShapeIoULoss(eps=1e-6, reduction="mean", loss_weight=1.0)
    loss = jax.block_until_ready(loss_mod(pred, target))

    ref = _shape_iou_ref(pred, target, eps=1e-6).mean()
    assert jnp.isfinite(loss), "loss is not finite"
    assert jnp.allclose(loss, ref, rtol=1e-5, atol=1e-5), (loss, ref)

    # Case 2: non-multiple-of-128 n exercises the padding path, 'none' reduction.
    n2 = 300
    pred2 = make_boxes(k1, n2)
    target2 = make_boxes(k2, n2)
    loss2 = jax.block_until_ready(loss_mod(pred2, target2, reduction_override="none"))
    ref2 = _shape_iou_ref(pred2, target2, eps=1e-6)
    assert loss2.shape == (n2, 1)
    assert bool(jnp.all(jnp.isfinite(loss2))), "per-box loss is not finite"
    assert jnp.allclose(loss2, ref2, rtol=1e-5, atol=1e-5)

    print("KERNEL_OK")
</pallas_src>

<mosaic_0001>
module attributes {stable_mosaic.version = 11 : i64} {
  func.func @_shape_iou_kernel(%arg0: i32, %arg1: memref<4x1x128xf32, #tpu.memory_space<vmem>>, %arg2: memref<4x1x128xf32, #tpu.memory_space<vmem>>, %arg3: memref<1x128xf32, #tpu.memory_space<vmem>>) attributes {dimension_semantics = [#tpu.dimension_semantics<parallel>], iteration_bounds = array<i64: 1>, scalar_prefetch = 0 : i64, scratch_operands = 0 : i64, tpu.core_type = #tpu.core_type<tc>, window_params = [{transform_indices = @transform_0, window_bounds = array<i64: 4, 1, 128>}, {transform_indices = @transform_1, window_bounds = array<i64: 4, 1, 128>}, {transform_indices = @transform_2, window_bounds = array<i64: 1, 128>}]} {
    %c0 = arith.constant 0 : index
    %c0_0 = arith.constant 0 : index
    %c0_1 = arith.constant 0 : index
    %0 = vector.load %arg1[%c0, %c0_0, %c0_1] : memref<4x1x128xf32, #tpu.memory_space<vmem>>, vector<1x1x128xf32>
    %1 = vector.shape_cast %0 : vector<1x1x128xf32> to vector<1x128xf32>
    %c1 = arith.constant 1 : index
    %c0_2 = arith.constant 0 : index
    %c0_3 = arith.constant 0 : index
    %2 = vector.load %arg1[%c1, %c0_2, %c0_3] : memref<4x1x128xf32, #tpu.memory_space<vmem>>, vector<1x1x128xf32>
    %3 = vector.shape_cast %2 : vector<1x1x128xf32> to vector<1x128xf32>
    %c2 = arith.constant 2 : index
    %c0_4 = arith.constant 0 : index
    %c0_5 = arith.constant 0 : index
    %4 = vector.load %arg1[%c2, %c0_4, %c0_5] : memref<4x1x128xf32, #tpu.memory_space<vmem>>, vector<1x1x128xf32>
    %5 = vector.shape_cast %4 : vector<1x1x128xf32> to vector<1x128xf32>
    %c3 = arith.constant 3 : index
    %c0_6 = arith.constant 0 : index
    %c0_7 = arith.constant 0 : index
    %6 = vector.load %arg1[%c3, %c0_6, %c0_7] : memref<4x1x128xf32, #tpu.memory_space<vmem>>, vector<1x1x128xf32>
    %7 = vector.shape_cast %6 : vector<1x1x128xf32> to vector<1x128xf32>
    %c0_8 = arith.constant 0 : index
    %c0_9 = arith.constant 0 : index
    %c0_10 = arith.constant 0 : index
    %8 = vector.load %arg2[%c0_8, %c0_9, %c0_10] : memref<4x1x128xf32, #tpu.memory_space<vmem>>, vector<1x1x128xf32>
    %9 = vector.shape_cast %8 : vector<1x1x128xf32> to vector<1x128xf32>
    %c1_11 = arith.constant 1 : index
    %c0_12 = arith.constant 0 : index
    %c0_13 = arith.constant 0 : index
    %10 = vector.load %arg2[%c1_11, %c0_12, %c0_13] : memref<4x1x128xf32, #tpu.memory_space<vmem>>, vector<1x1x128xf32>
    %11 = vector.shape_cast %10 : vector<1x1x128xf32> to vector<1x128xf32>
    %c2_14 = arith.constant 2 : index
    %c0_15 = arith.constant 0 : index
    %c0_16 = arith.constant 0 : index
    %12 = vector.load %arg2[%c2_14, %c0_15, %c0_16] : memref<4x1x128xf32, #tpu.memory_space<vmem>>, vector<1x1x128xf32>
    %13 = vector.shape_cast %12 : vector<1x1x128xf32> to vector<1x128xf32>
    %c3_17 = arith.constant 3 : index
    %c0_18 = arith.constant 0 : index
    %c0_19 = arith.constant 0 : index
    %14 = vector.load %arg2[%c3_17, %c0_18, %c0_19] : memref<4x1x128xf32, #tpu.memory_space<vmem>>, vector<1x1x128xf32>
    %15 = vector.shape_cast %14 : vector<1x1x128xf32> to vector<1x128xf32>
    %16 = arith.subf %3, %1 : vector<1x128xf32>
    %17 = arith.subf %7, %5 : vector<1x128xf32>
    %cst = arith.constant 9.99999997E-7 : f32
    %18 = vector.broadcast %cst : f32 to vector<1x128xf32>
    %19 = arith.addf %17, %18 : vector<1x128xf32>
    %20 = arith.subf %11, %9 : vector<1x128xf32>
    %21 = arith.subf %15, %13 : vector<1x128xf32>
    %cst_20 = arith.constant 9.99999997E-7 : f32
    %22 = vector.broadcast %cst_20 : f32 to vector<1x128xf32>
    %23 = arith.addf %21, %22 : vector<1x128xf32>
    %24 = arith.minimumf %3, %11 : vector<1x128xf32>
    %25 = arith.maximumf %1, %9 : vector<1x128xf32>
    %26 = arith.subf %24, %25 : vector<1x128xf32>
    %cst_21 = arith.constant 0.000000e+00 : f32
    %27 = vector.broadcast %cst_21 : f32 to vector<1x128xf32>
    %28 = arith.maximumf %26, %27 : vector<1x128xf32>
    %29 = arith.minimumf %7, %15 : vector<1x128xf32>
    %30 = arith.maximumf %5, %13 : vector<1x128xf32>
    %31 = arith.subf %29, %30 : vector<1x128xf32>
    %cst_22 = arith.constant 0.000000e+00 : f32
    %32 = vector.broadcast %cst_22 : f32 to vector<1x128xf32>
    %33 = arith.maximumf %31, %32 : vector<1x128xf32>
    %34 = arith.mulf %28, %33 : vector<1x128xf32>
    %35 = arith.mulf %16, %19 : vector<1x128xf32>
    %36 = arith.mulf %20, %23 : vector<1x128xf32>
    %37 = arith.addf %35, %36 : vector<1x128xf32>
    %38 = arith.subf %37, %34 : vector<1x128xf32>
    %cst_23 = arith.constant 9.99999997E-7 : f32
    %39 = vector.broadcast %cst_23 : f32 to vector<1x128xf32>
    %40 = arith.addf %38, %39 : vector<1x128xf32>
    %41 = arith.divf %34, %40 : vector<1x128xf32>
    %42 = math.log %20 : vector<1x128xf32>
    %cst_24 = arith.constant 8.000000e-01 : f32
    %43 = vector.broadcast %cst_24 : f32 to vector<1x128xf32>
    %44 = arith.mulf %43, %42 : vector<1x128xf32>
    %45 = math.exp %44 : vector<1x128xf32>
    %46 = math.log %23 : vector<1x128xf32>
    %cst_25 = arith.constant 8.000000e-01 : f32
    %47 = vector.broadcast %cst_25 : f32 to vector<1x128xf32>
    %48 = arith.mulf %47, %46 : vector<1x128xf32>
    %49 = math.exp %48 : vector<1x128xf32>
    %50 = arith.addf %45, %49 : vector<1x128xf32>
    %cst_26 = arith.constant 1.000000e+00 : f32
    %51 = vector.broadcast %cst_26 : f32 to vector<1x128xf32>
    %52 = arith.divf %51, %50 : vector<1x128xf32>
    %cst_27 = arith.constant 2.000000e+00 : f32
    %53 = vector.broadcast %cst_27 : f32 to vector<1x128xf32>
    %54 = arith.mulf %53, %45 : vector<1x128xf32>
    %55 = arith.mulf %54, %52 : vector<1x128xf32>
    %cst_28 = arith.constant 2.000000e+00 : f32
    %56 = vector.broadcast %cst_28 : f32 to vector<1x128xf32>
    %57 = arith.mulf %56, %49 : vector<1x128xf32>
    %58 = arith.mulf %57, %52 : vector<1x128xf32>
    %59 = arith.maximumf %3, %11 : vector<1x128xf32>
    %60 = arith.minimumf %1, %9 : vector<1x128xf32>
    %61 = arith.subf %59, %60 : vector<1x128xf32>
    %62 = arith.maximumf %7, %15 : vector<1x128xf32>
    %63 = arith.minimumf %5, %13 : vector<1x128xf32>
    %64 = arith.subf %62, %63 : vector<1x128xf32>
    %65 = arith.mulf %61, %61 : vector<1x128xf32>
    %66 = arith.mulf %64, %64 : vector<1x128xf32>
    %67 = arith.addf %65, %66 : vector<1x128xf32>
    %cst_29 = arith.constant 9.99999997E-7 : f32
    %68 = vector.broadcast %cst_29 : f32 to vector<1x128xf32>
    %69 = arith.addf %67, %68 : vector<1x128xf32>
    %70 = arith.addf %9, %11 : vector<1x128xf32>
    %71 = arith.subf %70, %1 : vector<1x128xf32>
    %72 = arith.subf %71, %3 : vector<1x128xf32>
    %73 = arith.addf %13, %15 : vector<1x128xf32>
    %74 = arith.subf %73, %5 : vector<1x128xf32>
    %75 = arith.subf %74, %7 : vector<1x128xf32>
    %76 = arith.mulf %72, %72 : vector<1x128xf32>
    %77 = arith.mulf %58, %76 : vector<1x128xf32>
    %78 = arith.mulf %75, %75 : vector<1x128xf32>
    %79 = arith.mulf %55, %78 : vector<1x128xf32>
    %80 = arith.addf %77, %79 : vector<1x128xf32>
    %cst_30 = arith.constant 2.500000e-01 : f32
    %81 = vector.broadcast %cst_30 : f32 to vector<1x128xf32>
    %82 = arith.mulf %81, %80 : vector<1x128xf32>
    %83 = arith.divf %82, %69 : vector<1x128xf32>
    %84 = arith.subf %16, %20 : vector<1x128xf32>
    %85 = math.absf %84 : vector<1x128xf32>
    %86 = arith.mulf %58, %85 : vector<1x128xf32>
    %87 = arith.maximumf %16, %20 : vector<1x128xf32>
    %88 = arith.divf %86, %87 : vector<1x128xf32>
    %89 = arith.subf %19, %23 : vector<1x128xf32>
    %90 = math.absf %89 : vector<1x128xf32>
    %91 = arith.mulf %55, %90 : vector<1x128xf32>
    %92 = arith.maximumf %19, %23 : vector<1x128xf32>
    %93 = arith.divf %91, %92 : vector<1x128xf32>
    %cst_31 = arith.constant 0.000000e+00 : f32
    %94 = vector.broadcast %cst_31 : f32 to vector<1x128xf32>
    %95 = arith.subf %94, %88 : vector<1x128xf32>
    %96 = math.exp %95 : vector<1x128xf32>
    %cst_32 = arith.constant 1.000000e+00 : f32
    %97 = vector.broadcast %cst_32 : f32 to vector<1x128xf32>
    %98 = arith.subf %97, %96 : vector<1x128xf32>
    %cst_33 = arith.constant 0.000000e+00 : f32
    %99 = vector.broadcast %cst_33 : f32 to vector<1x128xf32>
    %100 = arith.subf %99, %93 : vector<1x128xf32>
    %101 = math.exp %100 : vector<1x128xf32>
    %cst_34 = arith.constant 1.000000e+00 : f32
    %102 = vector.broadcast %cst_34 : f32 to vector<1x128xf32>
    %103 = arith.subf %102, %101 : vector<1x128xf32>
    %104 = arith.mulf %98, %98 : vector<1x128xf32>
    %105 = arith.mulf %103, %103 : vector<1x128xf32>
    %106 = arith.mulf %104, %104 : vector<1x128xf32>
    %107 = arith.mulf %105, %105 : vector<1x128xf32>
    %108 = arith.addf %106, %107 : vector<1x128xf32>
    %109 = arith.subf %41, %83 : vector<1x128xf32>
    %cst_35 = arith.constant 5.000000e-01 : f32
    %110 = vector.broadcast %cst_35 : f32 to vector<1x128xf32>
    %111 = arith.mulf %110, %108 : vector<1x128xf32>
    %112 = arith.subf %109, %111 : vector<1x128xf32>
    %cst_36 = arith.constant 1.000000e+00 : f32
    %113 = vector.broadcast %cst_36 : f32 to vector<1x128xf32>
    %114 = arith.subf %113, %112 : vector<1x128xf32>
    %c0_37 = arith.constant 0 : index
    %c0_38 = arith.constant 0 : index
    %115 = vector.load %arg3[%c0_37, %c0_38] : memref<1x128xf32, #tpu.memory_space<vmem>>, vector<1x128xf32>
    tpu.vector_store %arg3[%c0_37, %c0_38], %114 {strides = array<i32>} : memref<1x128xf32, #tpu.memory_space<vmem>>, vector<1x128xf32>,
    return
  }
  func.func @transform_0(%arg0: i32) -> (i32, i32, i32) {
    %c0_i32 = arith.constant 0 : i32
    %c0_i32_0 = arith.constant 0 : i32
    %c0_i32_1 = arith.constant 0 : i32
    return %c0_i32, %arg0, %c0_i32_0 : i32, i32, i32
  }
  func.func @transform_1(%arg0: i32) -> (i32, i32, i32) {
    %c0_i32 = arith.constant 0 : i32
    %c0_i32_0 = arith.constant 0 : i32
    %c0_i32_1 = arith.constant 0 : i32
    return %c0_i32, %arg0, %c0_i32_0 : i32, i32, i32
  }
  func.func @transform_2(%arg0: i32) -> (i32, i32) {
    %c0_i32 = arith.constant 0 : i32
    %c0_i32_0 = arith.constant 0 : i32
    return %arg0, %c0_i32 : i32, i32
  }
}

</mosaic_0001>

<llo_original>
// kernel: tpu_custom_call.1
$region0: #{tpu_custom_call.1}
  #allocation0 [shape = 'u32[]', space=smem, size = 0x4, offset = 0x4, fixed_abs, tag = 'smem constant byte address 0x4 - core index']
  #allocation1 [shape = 'u32[144,128]{1,0:T(1,128)}', space=vmem, size = 0x12000, scoped, tag = 'internal scratch']
  %s0 = inlined_call_operand.hbm [shape: f32[4,1,128], index: 0, kind: input, shape index: {}]
  %s1 = inlined_call_operand.hbm [shape: f32[4,1,128], index: 1, kind: input, shape index: {}]
  %s2 = inlined_call_operand.hbm [shape: f32[1,128], index: 2, kind: output, shape index: {}]
  %s3 = sld [smem:[#allocation0]]
  $region26: #{tpu_custom_call.1} parent=0
    _
  %s5 = ssub.s32 1, %s3
  %s6 = scalar_select 0, %s5, %s3
  $region1: #{tpu_custom_call.1} parent=0
    #allocation2 [shape = 'u8[2048]{0}', space=vmem, size = 0x800, scoped, tag = 'input window, operand 0, single buffered']
    #allocation3 [shape = 's32[1]{0}', space=sflag, size = 0x4, scoped, tag = 'scoped memory for tpu_custom_call.1']
    #allocation4 [shape = 's32[1]{0}', space=sflag, size = 0x4, scoped, tag = 'scoped memory for tpu_custom_call.1']
    #allocation5 [shape = 'u8[2048]{0}', space=vmem, size = 0x800, scoped, tag = 'input window, operand 1, single buffered']
    #allocation6 [shape = 's32[1]{0}', space=sflag, size = 0x4, scoped, tag = 'scoped memory for tpu_custom_call.1']
    #allocation7 [shape = 'u8[512]{0}', space=vmem, size = 0x400, scoped, tag = 'output window, operand 0, single buffered']
    %7 = vsyncpa [#allocation3], 0
    %8 = vsyncpa [#allocation6], 0
    %9 = vsyncpa [#allocation4], 0
    // Predicated region
    $region2: #{tpu_custom_call.1} parent=1 // pred_check
      _
    $region3: #{tpu_custom_call.1} parent=1 // pred_check_branch
      %11 = sbr.rel (0) target = $region5
    $region4: #{tpu_custom_call.1} parent=1 // pred_region
      %s13 = ssub.s32 64, 64
      %14 = vsyncadd [#allocation3], %s13
      %s15 = sshll.u32 [#allocation2], 4
      %s16 = int_to_ptr.vmem [resolvable:$true] %s15
      %21 = dma.hbm_to_vmem [thread:$0]  %s0, 64, %s16, [#allocation3], 16, 16, 1
    $region5: #{tpu_custom_call.1} parent=1 // pred_fallthru
      _
    // Predicated region
    $region6: #{tpu_custom_call.1} parent=1 // pred_check
      _
    $region7: #{tpu_custom_call.1} parent=1 // pred_check_branch
      %23 = sbr.rel (0) target = $region9
    $region8: #{tpu_custom_call.1} parent=1 // pred_region
      %s25 = ssub.s32 64, 64
      %26 = vsyncadd [#allocation6], %s25
      %s27 = sshll.u32 [#allocation5], 4
      %s28 = int_to_ptr.vmem [resolvable:$true] %s27
      %33 = dma.hbm_to_vmem [thread:$0]  %s1, 64, %s28, [#allocation6], 16, 16, 1
    $region9: #{tpu_custom_call.1} parent=1 // pred_fallthru
      _
    // Predicated region
    $region10: #{tpu_custom_call.1} parent=1 // pred_check
      _
    $region11: #{tpu_custom_call.1} parent=1 // pred_check_branch
      %35 = sbr.rel (0) target = $region13
    $region12: #{tpu_custom_call.1} parent=1 // pred_region
      %36 = dma.done [#allocation3], 64
    $region13: #{tpu_custom_call.1} parent=1 // pred_fallthru
      _
    // Predicated region
    $region14: #{tpu_custom_call.1} parent=1 // pred_check
      _
    $region15: #{tpu_custom_call.1} parent=1 // pred_check_branch
      %38 = sbr.rel (0) target = $region17
    $region16: #{tpu_custom_call.1} parent=1 // pred_region
      %39 = dma.done [#allocation6], 64
    $region17: #{tpu_custom_call.1} parent=1 // pred_fallthru
      _
    %v40 = vld [vmem:[#allocation2] sm:$0x1]
    %s41 = scalar_lea.vmem [#allocation2], 1
    %v42 = vld [vmem:[%s41] sm:$0x1]
    %s43 = scalar_lea.vmem [#allocation2], 2
    %v44 = vld [vmem:[%s43] sm:$0x1]
    %s45 = scalar_lea.vmem [#allocation2], 3
    %v46 = vld [vmem:[%s45] sm:$0x1]
    %v47 = vld [vmem:[#allocation5] sm:$0x1]
    %s48 = scalar_lea.vmem [#allocation5], 1
    %v49 = vld [vmem:[%s48] sm:$0x1]
    %s50 = scalar_lea.vmem [#allocation5], 2
    %v51 = vld [vmem:[%s50] sm:$0x1]
    %s52 = scalar_lea.vmem [#allocation5], 3
    %v53 = vld [vmem:[%s52] sm:$0x1]
    %v54 = vsub.f32 %v42, %v40
    %v55 = vsub.f32 %v46, %v44
    %v56 = vadd.f32 %v55, 1e-06
    %v57 = vsub.f32 %v49, %v47
    %v58 = vsub.f32 %v53, %v51
    %v59 = vadd.f32 %v58, 1e-06
    %v60 = vmin.f32 %v42, %v49
    %v61 = vmax.f32 %v40, %v47
    %v62 = vsub.f32 %v60, %v61
    %v63 = vmax.f32 %v62, 0.0
    %v64 = vmin.f32 %v46, %v53
    %v65 = vmax.f32 %v44, %v51
    %v66 = vsub.f32 %v64, %v65
    %v67 = vmax.f32 %v66, 0.0
    %v68 = vmul.f32 %v63, %v67
    %v69 = vmul.f32 %v54, %v56
    %v70 = vmul.f32 %v57, %v59
    %v71 = vadd.f32 %v69, %v70
    %v72 = vsub.f32 %v71, %v68
    %v73 = vadd.f32 %v72, 1e-06
    %v74 = vrcp.pop %v73
    %v75 = vmul.f32 %v68, %v74
    %v76 = vlog2.pop %v57
    %v77 = vmul.f32 %v76, 0.6931472
    %v78 = vmul.f32 %v77, 0.8
    %v79 = vmul.f32 %v78, 1.442695
    %v80 = vpow.pop %v79
    %v81 = vlog2.pop %v59
    %v82 = vmul.f32 %v81, 0.6931472
    %v83 = vmul.f32 %v82, 0.8
    %v84 = vmul.f32 %v83, 1.442695
    %v85 = vpow.pop %v84
    %v86 = vadd.f32 %v80, %v85
    %v87 = vrcp.pop %v86
    %v88 = vmul.f32 1.0, %v87
    %v89 = vmul.f32 %v80, 2.0
    %v90 = vmul.f32 %v89, %v88
    %v91 = vmul.f32 %v85, 2.0
    %v92 = vmul.f32 %v91, %v88
    %v93 = vmax.f32 %v42, %v49
    %v94 = vmin.f32 %v40, %v47
    %v95 = vsub.f32 %v93, %v94
    %v96 = vmax.f32 %v46, %v53
    %v97 = vmin.f32 %v44, %v51
    %v98 = vsub.f32 %v96, %v97
    %v99 = vmul.f32 %v95, %v95
    %v100 = vmul.f32 %v98, %v98
    %v101 = vadd.f32 %v99, %v100
    %v102 = vadd.f32 %v101, 1e-06
    %v103 = vadd.f32 %v47, %v49
    %v104 = vsub.f32 %v103, %v40
    %v105 = vsub.f32 %v104, %v42
    %v106 = vadd.f32 %v51, %v53
    %v107 = vsub.f32 %v106, %v44
    %v108 = vsub.f32 %v107, %v46
    %v109 = vmul.f32 %v105, %v105
    %v110 = vmul.f32 %v92, %v109
    %v111 = vmul.f32 %v108, %v108
    %v112 = vmul.f32 %v90, %v111
    %v113 = vadd.f32 %v110, %v112
    %v114 = vmul.f32 %v113, 0.25
    %v115 = vrcp.pop %v102
    %v116 = vmul.f32 %v114, %v115
    %v117 = vsub.f32 %v54, %v57
    %v118 = vand.u32 2147483647, %v117
    %v119 = vmul.f32 %v92, %v118
    %v120 = vmax.f32 %v54, %v57
    %v121 = vrcp.pop %v120
    %v122 = vmul.f32 %v119, %v121
    %v123 = vsub.f32 %v56, %v59
    %v124 = vand.u32 2147483647, %v123
    %v125 = vmul.f32 %v90, %v124
    %v126 = vmax.f32 %v56, %v59
    %v127 = vrcp.pop %v126
    %v128 = vmul.f32 %v125, %v127
    %v129 = vsub.f32 0.0, %v122
    %v130 = vmul.f32 %v129, 1.442695
    %v131 = vpow.pop %v130
    %v132 = vsub.f32 1.0, %v131
    %v133 = vsub.f32 0.0, %v128
    %v134 = vmul.f32 %v133, 1.442695
    %v135 = vpow.pop %v134
    %v136 = vsub.f32 1.0, %v135
    %v137 = vmul.f32 %v132, %v132
    %v138 = vmul.f32 %v136, %v136
    %v139 = vmul.f32 %v137, %v137
    %v140 = vmul.f32 %v138, %v138
    %v141 = vadd.f32 %v139, %v140
    %v142 = vsub.f32 %v75, %v116
    %v143 = vmul.f32 %v141, 0.5
    %v144 = vsub.f32 %v142, %v143
    %v145 = vsub.f32 1.0, %v144
    %146 = vst [vmem:[#allocation7] sm:$0x1] %v145
    // Predicated region
    $region18: #{tpu_custom_call.1} parent=1 // pred_check
      _
    $region19: #{tpu_custom_call.1} parent=1 // pred_check_branch
      %148 = sbr.rel (0) target = $region21
    $region20: #{tpu_custom_call.1} parent=1 // pred_region
      %s150 = ssub.s32 16, 16
      %151 = vsyncadd [#allocation4], %s150
      %s153 = sshll.u32 [#allocation7], 4
      %s154 = int_to_ptr.vmem [resolvable:$true] %s153
      %156 = dma.vmem_to_hbm [thread:$0]  %s154, 16, %s2, [#allocation4]
    $region21: #{tpu_custom_call.1} parent=1 // pred_fallthru
      _
    // Predicated region
    $region22: #{tpu_custom_call.1} parent=1 // pred_check
      _
    $region23: #{tpu_custom_call.1} parent=1 // pred_check_branch
      %158 = sbr.rel (0) target = $region25
    $region24: #{tpu_custom_call.1} parent=1 // pred_region
      %159 = dma.done [#allocation4], 16
    $region25: #{tpu_custom_call.1} parent=1 // pred_fallthru
      _
    %160 = vsyncpa [#allocation3], 1
    %161 = vsyncpa [#allocation6], 1
    %162 = vsyncpa [#allocation4], 1

</llo_original>
